<compile_context>
chip_gen: v6e
topology: v6e:2x2x1
jax: 0.10.0
libtpu: 0.0.40
codegen_flags: <defaults>
</compile_context>

<pallas_src>
import functools

import jax
import jax.numpy as jnp
from jax import lax
from jax.experimental import pallas as pl
from jax.experimental.pallas import tpu as pltpu


def _round_up(x, m):
    return ((x + m - 1) // m) * m


def _expansion_matrix(w, s, dtype):
    """E of shape (W, s*W) with E[w0, j] = 1 iff j // s == w0 (0/1 values)."""
    col = lax.broadcasted_iota(jnp.int32, (w, s * w), 1)
    row = lax.broadcasted_iota(jnp.int32, (w, s * w), 0)
    mask = jnp.logical_and(col >= row * s, col < row * s + s)
    return jnp.where(mask, 1.0, 0.0).astype(dtype)


def _interleave_lanes(x, s):
    """(R, W) -> (R, W*s) with out[:, w*s + r] = x[:, w]; bit-exact.

    Uses the MXU (idle in this memory-bound kernel) with a 0/1 expansion
    matrix.  For 32-bit data the raw bits are routed in four 8-bit chunks so
    the result is exact for every bit pattern independent of MXU precision.
    """
    if s == 1:
        return x
    r, w = x.shape

    if x.dtype == jnp.bfloat16:
        # bf16 operands pass through the MXU exactly; single nonzero addend.
        e = _expansion_matrix(w, s, jnp.bfloat16)
        y = jnp.dot(x, e, preferred_element_type=jnp.float32)
        return y.astype(jnp.bfloat16)

    orig_dtype = x.dtype
    if x.dtype == jnp.float16:
        x = x.astype(jnp.float32)  # exact upcast
    assert x.dtype == jnp.float32, "only float32/bfloat16/float16 supported"
    # TODO(synk): integer dtypes would need a different exact routing path.

    e = _expansion_matrix(w, s, jnp.float32)
    bits = pltpu.bitcast(x, jnp.int32)
    out_bits = jnp.zeros((r, w * s), dtype=jnp.int32)
    for k in range(4):
        # Byte k of each element (arithmetic shift + mask gives the raw byte).
        chunk = jnp.bitwise_and(jnp.right_shift(bits, 8 * k), 0xFF)
        yk = jnp.dot(chunk.astype(jnp.float32), e,
                     preferred_element_type=jnp.float32)
        out_bits = jnp.bitwise_or(
            out_bits, jnp.left_shift(yk.astype(jnp.int32), 8 * k))
    out = pltpu.bitcast(out_bits, jnp.float32)
    return out if orig_dtype == jnp.float32 else out.astype(orig_dtype)


def _upsample_nchw_kernel(x_ref, o_ref, *, s):
    # x_ref: (TH, W) tile of the (N*C*H, W) view.
    # o_ref: (TH, s*s*W) tile of the (N*C*H, s*s*W) output view (same block i).
    x = x_ref[...]
    y = _interleave_lanes(x, s)          # (TH, s*W): W-replication
    sw = y.shape[-1]
    # H-replication: each output row is s consecutive copies of the
    # interleaved row -> s static lane-slice stores (no concat, no shuffles).
    for r in range(s):
        o_ref[:, r * sw:(r + 1) * sw] = y


def _pick_rows_per_block(n_rows, w, s, itemsize):
    """Rows of the (N*C*H, W) view per grid step.

    Targets ~8 MiB output tiles (per-step overhead <10% even at v7x's
    ~3.2 TB/s) while the double-buffered pipeline buffers plus in-kernel
    temporaries stay well inside the 48 MiB vmem limit (safe on v7x's 64 MiB
    per-TC VMEM).  Byte math uses (sublane, lane)-padded sizes so unaligned
    W cannot overshoot the budget.  The grid uses cdiv, so th need not divide
    n_rows (no th=1 collapse for prime/awkward N*C*H).
    """
    LANE = 128
    sub = 8 if itemsize >= 4 else 16
    OUT_TILE_TARGET = 8 << 20
    VMEM_BUDGET = 36 << 20
    in_row = _round_up(w, LANE) * itemsize
    out_row = _round_up(s * s * w, LANE) * itemsize
    # double-buffered in/out pipeline buffers + rough kernel temporaries
    per_row = 2 * (in_row + out_row) + 4 * in_row + 2 * out_row
    cap = max(1, min(OUT_TILE_TARGET // out_row, VMEM_BUDGET // per_row))
    if cap >= n_rows:
        # Whole problem fits in one tile: still split larger problems into ~4
        # blocks so the "parallel" axis can shard across both TensorCores on
        # 2-TC parts (v7x); tiny problems stay single-tile.
        if n_rows >= 8 * sub:
            return min(n_rows, _round_up(pl.cdiv(n_rows, 4), sub))
        return n_rows
    th = max(sub, (cap // sub) * sub)
    # Prefer an even grid count so a 2-TC part gets a balanced split.
    g = pl.cdiv(n_rows, th)
    if g % 2 and g >= 3:
        th = max(sub, _round_up(pl.cdiv(n_rows, g + 1), sub))
    return th


def upsample_nearest(x, scale_factor=1, mode="nearest"):
    """Equivalent of F.interpolate(x, scale_factor=s, mode='nearest'); NCHW in/out."""
    assert mode == "nearest", "only mode='nearest' is implemented"
    s = int(scale_factor)
    assert s >= 1 and s == scale_factor, "only positive integer scale factors"
    # TODO(synk): non-integer scale factors / other interpolation modes are not implemented.
    if s == 1:
        return x

    N, C, H, W = x.shape
    itemsize = jnp.dtype(x.dtype).itemsize
    n_rows = N * C * H

    # Free reshapes only -- the kernel consumes/produces the NCHW layout directly.
    x2 = x.reshape(n_rows, W)
    th = _pick_rows_per_block(n_rows, W, s, itemsize)
    grid = pl.cdiv(n_rows, th)

    n_mm = 1 if x.dtype == jnp.bfloat16 else 4
    cost = pl.CostEstimate(
        flops=2 * n_mm * n_rows * W * s * W,
        transcendentals=0,
        bytes_accessed=(1 + s * s) * n_rows * W * itemsize,
    )

    out2 = pl.pallas_call(
        functools.partial(_upsample_nchw_kernel, s=s),
        out_shape=jax.ShapeDtypeStruct((n_rows, s * s * W), x.dtype),
        grid_spec=pltpu.PrefetchScalarGridSpec(
            num_scalar_prefetch=0,
            grid=(grid,),
            in_specs=[pl.BlockSpec((th, W), lambda i: (i, 0))],
            out_specs=pl.BlockSpec((th, s * s * W), lambda i: (i, 0)),
        ),
        compiler_params=pltpu.CompilerParams(
            dimension_semantics=("parallel",),
            vmem_limit_bytes=48 * 1024 * 1024,
        ),
        cost_estimate=cost,
    )(x2)

    # (N*C*H, s*s*W) is bit-identical in memory to NCHW (N, C, H*s, W*s).
    return out2.reshape(N, C, H * s, W * s)


if __name__ == "__main__":
    key = jax.random.PRNGKey(0)
    N, C, H, W = 2, 4, 16, 16
    scale_factor = 2

    # float32 path (8-bit chunk routing through the MXU; bit-exact).
    x = jax.random.normal(key, (N, C, H, W), dtype=jnp.float32)
    out = jax.block_until_ready(upsample_nearest(x, scale_factor=scale_factor))
    ref = jnp.repeat(jnp.repeat(x, scale_factor, axis=2), scale_factor, axis=3)
    assert out.shape == (N, C, H * scale_factor, W * scale_factor), out.shape
    assert jnp.array_equal(out, ref), "f32 mismatch vs reference nearest upsample"

    # bfloat16 path (single bf16 matmul; bit-exact, dtype passthrough).
    xb = x.astype(jnp.bfloat16)
    outb = jax.block_until_ready(upsample_nearest(xb, scale_factor=scale_factor))
    refb = jnp.repeat(jnp.repeat(xb, scale_factor, axis=2), scale_factor, axis=3)
    assert outb.dtype == jnp.bfloat16
    assert jnp.array_equal(outb, refb), "bf16 mismatch vs reference nearest upsample"

    print("KERNEL_OK")
</pallas_src>

<mosaic_0001>
module attributes {stable_mosaic.version = 11 : i64} {
  func.func @_upsample_nchw_kernel(%arg0: i32, %arg1: memref<32x16xf32, #tpu.memory_space<vmem>>, %arg2: memref<32x64xf32, #tpu.memory_space<vmem>>) attributes {dimension_semantics = [#tpu.dimension_semantics<parallel>], iteration_bounds = array<i64: 4>, scalar_prefetch = 0 : i64, scratch_operands = 0 : i64, tpu.core_type = #tpu.core_type<tc>, window_params = [{transform_indices = @transform_0, window_bounds = array<i64: 32, 16>}, {transform_indices = @transform_1, window_bounds = array<i64: 32, 64>}]} {
    %c0 = arith.constant 0 : index
    %c0_0 = arith.constant 0 : index
    %0 = vector.load %arg1[%c0, %c0_0] : memref<32x16xf32, #tpu.memory_space<vmem>>, vector<32x16xf32>
    %1 = tpu.iota {dimensions = array<i32: 1>} : vector<16x32xi32>
    %2 = tpu.iota {dimensions = array<i32: 0>} : vector<16x32xi32>
    %c2_i32 = arith.constant 2 : i32
    %3 = vector.broadcast %c2_i32 : i32 to vector<16x32xi32>
    %4 = arith.muli %2, %3 : vector<16x32xi32>
    %5 = arith.cmpi sge, %1, %4 : vector<16x32xi32>
    %c2_i32_1 = arith.constant 2 : i32
    %6 = vector.broadcast %c2_i32_1 : i32 to vector<16x32xi32>
    %7 = arith.muli %2, %6 : vector<16x32xi32>
    %c2_i32_2 = arith.constant 2 : i32
    %8 = vector.broadcast %c2_i32_2 : i32 to vector<16x32xi32>
    %9 = arith.addi %7, %8 : vector<16x32xi32>
    %10 = arith.cmpi slt, %1, %9 : vector<16x32xi32>
    %11 = arith.andi %5, %10 : vector<16x32xi1>
    %cst = arith.constant 1.000000e+00 : f32
    %cst_3 = arith.constant 0.000000e+00 : f32
    %12 = vector.broadcast %cst : f32 to vector<16x32xf32>
    %13 = vector.broadcast %cst_3 : f32 to vector<16x32xf32>
    %14 = arith.select %11, %12, %13 : vector<16x32xi1>, vector<16x32xf32>
    %15 = tpu.bitcast %0 : vector<32x16xf32> -> vector<32x16xi32>
    %c0_i32 = arith.constant 0 : i32
    %16 = vector.broadcast %c0_i32 : i32 to vector<32x32xi32>
    %c0_i32_4 = arith.constant 0 : i32
    %17 = vector.broadcast %c0_i32_4 : i32 to vector<32x16xi32>
    %18 = arith.shrsi %15, %17 : vector<32x16xi32>
    %c255_i32 = arith.constant 255 : i32
    %19 = vector.broadcast %c255_i32 : i32 to vector<32x16xi32>
    %20 = arith.andi %18, %19 : vector<32x16xi32>
    %21 = arith.sitofp %20 : vector<32x16xi32> to vector<32x16xf32>
    %cst_5 = arith.constant dense<0.000000e+00> : vector<32x32xf32>
    %22 = tpu.matmul %21, %14, %cst_5 {dimension_numbers = #tpu.dot_dimension_numbers<[1], [0], [0], [1], [0, 0, 1, 1], [], []>} : vector<32x16xf32>, vector<16x32xf32>, vector<32x32xf32> -> vector<32x32xf32>
    %23 = arith.fptosi %22 : vector<32x32xf32> to vector<32x32xi32>
    %c0_i32_6 = arith.constant 0 : i32
    %24 = vector.broadcast %c0_i32_6 : i32 to vector<32x32xi32>
    %25 = arith.shli %23, %24 : vector<32x32xi32>
    %26 = arith.ori %16, %25 : vector<32x32xi32>
    %c8_i32 = arith.constant 8 : i32
    %27 = vector.broadcast %c8_i32 : i32 to vector<32x16xi32>
    %28 = arith.shrsi %15, %27 : vector<32x16xi32>
    %c255_i32_7 = arith.constant 255 : i32
    %29 = vector.broadcast %c255_i32_7 : i32 to vector<32x16xi32>
    %30 = arith.andi %28, %29 : vector<32x16xi32>
    %31 = arith.sitofp %30 : vector<32x16xi32> to vector<32x16xf32>
    %cst_8 = arith.constant dense<0.000000e+00> : vector<32x32xf32>
    %32 = tpu.matmul %31, %14, %cst_8 {dimension_numbers = #tpu.dot_dimension_numbers<[1], [0], [0], [1], [0, 0, 1, 1], [], []>} : vector<32x16xf32>, vector<16x32xf32>, vector<32x32xf32> -> vector<32x32xf32>
    %33 = arith.fptosi %32 : vector<32x32xf32> to vector<32x32xi32>
    %c8_i32_9 = arith.constant 8 : i32
    %34 = vector.broadcast %c8_i32_9 : i32 to vector<32x32xi32>
    %35 = arith.shli %33, %34 : vector<32x32xi32>
    %36 = arith.ori %26, %35 : vector<32x32xi32>
    %c16_i32 = arith.constant 16 : i32
    %37 = vector.broadcast %c16_i32 : i32 to vector<32x16xi32>
    %38 = arith.shrsi %15, %37 : vector<32x16xi32>
    %c255_i32_10 = arith.constant 255 : i32
    %39 = vector.broadcast %c255_i32_10 : i32 to vector<32x16xi32>
    %40 = arith.andi %38, %39 : vector<32x16xi32>
    %41 = arith.sitofp %40 : vector<32x16xi32> to vector<32x16xf32>
    %cst_11 = arith.constant dense<0.000000e+00> : vector<32x32xf32>
    %42 = tpu.matmul %41, %14, %cst_11 {dimension_numbers = #tpu.dot_dimension_numbers<[1], [0], [0], [1], [0, 0, 1, 1], [], []>} : vector<32x16xf32>, vector<16x32xf32>, vector<32x32xf32> -> vector<32x32xf32>
    %43 = arith.fptosi %42 : vector<32x32xf32> to vector<32x32xi32>
    %c16_i32_12 = arith.constant 16 : i32
    %44 = vector.broadcast %c16_i32_12 : i32 to vector<32x32xi32>
    %45 = arith.shli %43, %44 : vector<32x32xi32>
    %46 = arith.ori %36, %45 : vector<32x32xi32>
    %c24_i32 = arith.constant 24 : i32
    %47 = vector.broadcast %c24_i32 : i32 to vector<32x16xi32>
    %48 = arith.shrsi %15, %47 : vector<32x16xi32>
    %c255_i32_13 = arith.constant 255 : i32
    %49 = vector.broadcast %c255_i32_13 : i32 to vector<32x16xi32>
    %50 = arith.andi %48, %49 : vector<32x16xi32>
    %51 = arith.sitofp %50 : vector<32x16xi32> to vector<32x16xf32>
    %cst_14 = arith.constant dense<0.000000e+00> : vector<32x32xf32>
    %52 = tpu.matmul %51, %14, %cst_14 {dimension_numbers = #tpu.dot_dimension_numbers<[1], [0], [0], [1], [0, 0, 1, 1], [], []>} : vector<32x16xf32>, vector<16x32xf32>, vector<32x32xf32> -> vector<32x32xf32>
    %53 = arith.fptosi %52 : vector<32x32xf32> to vector<32x32xi32>
    %c24_i32_15 = arith.constant 24 : i32
    %54 = vector.broadcast %c24_i32_15 : i32 to vector<32x32xi32>
    %55 = arith.shli %53, %54 : vector<32x32xi32>
    %56 = arith.ori %46, %55 : vector<32x32xi32>
    %57 = tpu.bitcast %56 : vector<32x32xi32> -> vector<32x32xf32>
    %c0_16 = arith.constant 0 : index
    %c0_17 = arith.constant 0 : index
    %58 = vector.load %arg2[%c0_16, %c0_17] : memref<32x64xf32, #tpu.memory_space<vmem>>, vector<32x32xf32>
    tpu.vector_store %arg2[%c0_16, %c0_17], %57 {strides = array<i32>} : memref<32x64xf32, #tpu.memory_space<vmem>>, vector<32x32xf32>,
    %c0_18 = arith.constant 0 : index
    %c32 = arith.constant 32 : index
    %59 = vector.load %arg2[%c0_18, %c32] : memref<32x64xf32, #tpu.memory_space<vmem>>, vector<32x32xf32>
    tpu.vector_store %arg2[%c0_18, %c32], %57 {strides = array<i32>} : memref<32x64xf32, #tpu.memory_space<vmem>>, vector<32x32xf32>,
    return
  }
  func.func @transform_0(%arg0: i32) -> (i32, i32) {
    %c0_i32 = arith.constant 0 : i32
    %c0_i32_0 = arith.constant 0 : i32
    return %arg0, %c0_i32 : i32, i32
  }
  func.func @transform_1(%arg0: i32) -> (i32, i32) {
    %c0_i32 = arith.constant 0 : i32
    %c0_i32_0 = arith.constant 0 : i32
    return %arg0, %c0_i32 : i32, i32
  }
}

</mosaic_0001>

<llo_original>
// kernel: tpu_custom_call.1
$region0: #{tpu_custom_call.1}
  #allocation0 [shape = 'u32[]', space=smem, size = 0x4, offset = 0x4, fixed_abs, tag = 'smem constant byte address 0x4 - core index']
  #allocation1 [shape = 'u32[144,128]{1,0:T(1,128)}', space=vmem, size = 0x12000, scoped, tag = 'internal scratch']
  %s0 = inlined_call_operand.vmem [shape: f32[128,16], index: 0, kind: input, shape index: {}]
  %s1 = inlined_call_operand.vmem [shape: f32[128,64], index: 1, kind: output, shape index: {}]
  %s2 = sld [smem:[#allocation0]]
  $region37: #{tpu_custom_call.1} parent=0
    _
  %s4 = ssub.s32 1, %s2
  %s5 = scalar_select 0, %s4, %s2
  loop: start=0, step=1, limit=6
  $region2: #{tpu_custom_call.1} parent=0 // loop_pre_header
    _
  $region3: #{tpu_custom_call.1} parent=0 // loop_header
    %s7 = sphi 0, %s11
    %p8 = scmp.ge.s32.totalorder %s7, 6
    %s17 = sphi 0, %s19
    %s20 = sphi 0, %s17
    %s21 = sphi 0, %s20
    %s37 = sphi 0, %s21
    %s43 = sphi 0, %s45
    %s46 = sphi 0, %s43
    %s47 = sphi 0, %s46
    %s63 = sphi 0, %s47
  $region4: #{tpu_custom_call.1} parent=0 // loop_header_branch
    %10 = sbr.rel (%p8) target = $region8
  $region5: #{tpu_custom_call.1} parent=0 // loop_body
    %s12 = ssub.s32 %s7, 1
    %s13 = ssub.s32 %s7, 2
    %s14 = sadd.s32 %s7, 1
    %s15 = ssub.s32 %s7, %s14
    %p16 = scmp.eq.s32.totalorder %s15, 0
    %s18 = sadd.s32 %s17, 1
    %s19 = scalar_select %p16, %s17, %s18
    %p22 = pneg %p16
    %p23 = scmp.eq.s32.totalorder %s7, 3
    %p24 = por %p22, %p23
    %p25 = scmp.ne.s32.totalorder %s17, %s20
    %p26 = scmp.eq.s32.totalorder %s7, 0
    %p27 = por %p25, %p26
    %p28 = scmp.ne.s32.totalorder %s17, %s20
    %p29 = scmp.eq.s32.totalorder %s12, 3
    %p30 = por %p28, %p29
    %p31 = scmp.ne.s32.totalorder %s20, %s21
    %p32 = scmp.eq.s32.totalorder %s12, 0
    %p33 = por %p31, %p32
    %p34 = scmp.ne.s32.totalorder %s20, %s21
    %p35 = scmp.eq.s32.totalorder %s13, 3
    %p36 = por %p34, %p35
    %p38 = scmp.ne.s32.totalorder %s21, %s37
    %p39 = scmp.eq.s32.totalorder %s13, 0
    %p40 = por %p38, %p39
    %s41 = ssub.s32 %s7, %s14
    %p42 = scmp.eq.s32.totalorder %s41, 0
    %s44 = sadd.s32 %s43, 1
    %s45 = scalar_select %p42, %s43, %s44
    %p48 = pneg %p42
    %p49 = scmp.eq.s32.totalorder %s7, 3
    %p50 = por %p48, %p49
    %p51 = scmp.ne.s32.totalorder %s43, %s46
    %p52 = scmp.eq.s32.totalorder %s7, 0
    %p53 = por %p51, %p52
    %p54 = scmp.ne.s32.totalorder %s43, %s46
    %p55 = scmp.eq.s32.totalorder %s12, 3
    %p56 = por %p54, %p55
    %p57 = scmp.ne.s32.totalorder %s46, %s47
    %p58 = scmp.eq.s32.totalorder %s12, 0
    %p59 = por %p57, %p58
    %p60 = scmp.ne.s32.totalorder %s46, %s47
    %p61 = scmp.eq.s32.totalorder %s13, 3
    %p62 = por %p60, %p61
    %p64 = scmp.ne.s32.totalorder %s47, %s63
    %p65 = scmp.eq.s32.totalorder %s13, 0
    %p66 = por %p64, %p65
    %p67 = scmp.le.s32.totalorder 1, %s7
    %p68 = scmp.lt.s32.totalorder %s7, 5
    %p69 = pnand %p67, %p68
    %p70 = pneg %p69
    // Predicated region
    $region9: #{tpu_custom_call.1} parent=5 // pred_check
      _
    $region10: #{tpu_custom_call.1} parent=5 // pred_check_branch
      %72 = sbr.rel (%p69) target = $region12
    $region11: #{tpu_custom_call.1} parent=5 // pred_region
      %s73 = ssub.s32 %s7, 1
    $region12: #{tpu_custom_call.1} parent=5 // pred_fallthru
      _
    %p74 = scmp.lt.s32.totalorder %s7, 4
    // Predicated region
    $region13: #{tpu_custom_call.1} parent=5 // pred_check
      %p75 = pneg %p74
    $region14: #{tpu_custom_call.1} parent=5 // pred_check_branch
      %77 = sbr.rel (%p75) target = $region16
    $region15: #{tpu_custom_call.1} parent=5 // pred_region
      // Predicated region
      $region17: #{tpu_custom_call.1} parent=15 // pred_check
        %p78 = pneg %p27
      $region18: #{tpu_custom_call.1} parent=15 // pred_check_branch
        %80 = sbr.rel (%p78) target = $region20
      $region19: #{tpu_custom_call.1} parent=15 // pred_region
        %s81 = smul.u32 4, %s7
        %p82 = scmp.lt.s32.totalorder %s81, 15
        %s83 = scalar_select %p82, %s81, 15
        %s84 = smul.addr %s83, 8
        %s85 = scalar_lea.vmem %s0, %s84
        %s86 = smul.u32 4, %s7
      $region20: #{tpu_custom_call.1} parent=15 // pred_fallthru
        _
    $region16: #{tpu_custom_call.1} parent=5 // pred_fallthru
      _
    %p87 = scmp.le.s32.totalorder 1, %s7
    %p88 = scmp.lt.s32.totalorder %s7, 5
    %p89 = pnand %p87, %p88
    %p90 = pneg %p89
    // Predicated region
    $region21: #{tpu_custom_call.1} parent=5 // pred_check
      _
    $region22: #{tpu_custom_call.1} parent=5 // pred_check_branch
      %92 = sbr.rel (%p89) target = $region24
    $region23: #{tpu_custom_call.1} parent=5 // pred_region
      %s93 = ssub.s32 %s7, 1
      %s94 = smul.u32 4, %s12
      %p95 = scmp.lt.s32.totalorder %s94, 15
      %s96 = scalar_select %p95, %s94, 15
      %s97 = smul.addr %s96, 8
      %s98 = scalar_lea.vmem %s0, %s97
      %p99 = pneg %p33
      %p100 = pneg %p30
      %p101 = pneg %p59
      %p102 = pneg %p56
      %s103 = smul.u32 4, %s12
      %p104 = scmp.lt.s32.totalorder %s103, 15
      %s105 = scalar_select %p104, %s103, 15
      %s106 = smul.addr %s105, 8
      %s107 = scalar_lea.vmem %s1, %s106
      %s108 = smul.u32 4, %s12
      %p109 = scmp.lt.s32.totalorder %s108, 15
      %s110 = scalar_select %p109, %s108, 15
      %s111 = smul.addr %s110, 8
      %s112 = scalar_lea.vmem %s0, %s111
      %s113 = smul.u32 4, %s12
      %s114 = smul.u32 4, %s12
      %p115 = scmp.lt.s32.totalorder %s114, 15
      %s116 = scalar_select %p115, %s114, 15
      %s117 = smul.addr %s116, 8
      %s118 = scalar_lea.vmem %s1, %s117
      %s119 = smul.u32 4, %s12
      %v120 = vld [vmem:[%s112] sm:$0xff]
      %v121 = vld [vmem:[%s112 + $0x8] sm:$0xff]
      %v122 = vld [vmem:[%s112 + $0x10] sm:$0xff]
      %v123 = vld [vmem:[%s112 + $0x18] sm:$0xff]
      %v124 = vlaneseq
      %v125 = vand.u32 %v124, 127
      %v126 = vlaneseq
      %v127 = vshrl.u32 %v126, 7
      %v128 = vadd.s32 %v127, 8
      %v129 = vmul.u32 %v127, 2
      %v130 = vmul.u32 %v128, 2
      %vm131 = vcmp.ge.s32.totalorder %v125, %v129
      %vm132 = vcmp.ge.s32.totalorder %v125, %v130
      %v133 = vadd.s32 %v129, 2
      %v134 = vadd.s32 %v130, 2
      %vm135 = vcmp.lt.s32.totalorder %v125, %v133
      %vm136 = vcmp.lt.s32.totalorder %v125, %v134
      %vm137 = vmand %vm131, %vm135
      %vm138 = vmand %vm132, %vm136
      %v139 = vsel %vm137, 1.0, 0.0
      %v140 = vsel %vm138, 1.0, 0.0
      %v145 = vand.u32 %v120, 255
      %v146 = vand.u32 %v121, 255
      %v147 = vand.u32 %v122, 255
      %v148 = vand.u32 %v123, 255
      %v149 = vcvt.s32.f32 %v145
      %v150 = vcvt.s32.f32 %v146
      %v151 = vcvt.s32.f32 %v147
      %v152 = vcvt.s32.f32 %v148
      %vm153 = vcmask 130048
      %v155 = vsel %vm153, %v149, 0
      %v158 = vsel %vm153, %v150, 0
      %v161 = vsel %vm153, %v151, 0
      %v164 = vsel %vm153, %v152, 0
      %166 = vmatprep.subr.mxu0 0.0
      %167 = vmatpush1.msra.mxu0 0.0
      %168 = vmatprep.subr.mxu0 0.0
      %169 = vmatpush1.msra.mxu0 0.0
      %170 = vmatprep.subr.mxu0 0.0
      %171 = vmatpush1.msra.mxu0 0.0
      %172 = vmatprep.subr.mxu0 0.0
      %173 = vmatpush1.msra.mxu0 0.0
      %174 = vmatprep.subr.mxu0 0.0
      %175 = vmatpush1.msra.mxu0 0.0
      %176 = vmatprep.subr.mxu0 0.0
      %177 = vmatpush1.msra.mxu0 0.0
      %178 = vmatprep.subr.mxu0 0.0
      %179 = vmatpush1.msra.mxu0 0.0
      %180 = vmatprep.subr.mxu0 0.0
      %181 = vmatpush1.msra.mxu0 0.0
      %182 = vmatprep.subr.mxu0 0.0
      %183 = vmatpush1.msra.mxu0 0.0
      %184 = vmatprep.subr.mxu0 0.0
      %185 = vmatpush1.msra.mxu0 0.0
      %186 = vmatprep.subr.mxu0 0.0
      %187 = vmatpush1.msra.mxu0 0.0
      %188 = vmatprep.subr.mxu0 0.0
      %189 = vmatpush1.msra.mxu0 0.0
      %190 = vmatprep.subr.mxu0 0.0
      %191 = vmatpush1.msra.mxu0 0.0
      %192 = vmatprep.subr.mxu0 0.0
      %193 = vmatpush1.msra.mxu0 0.0
      %194 = vmatprep.subr.mxu0 0.0
      %195 = vmatpush1.msra.mxu0 %v140
      %196 = vmatprep.subr.mxu0 0.0
      %197 = vmatpush1.msra.mxu0 %v139
      %198 = vmatprep.subr.mxu0 0.0
      %199 = vmatpush2.msra.mxu0 0.0
      %200 = vmatprep.subr.mxu0 0.0
      %201 = vmatpush2.msra.mxu0 0.0
      %202 = vmatprep.subr.mxu0 0.0
      %203 = vmatpush2.msra.mxu0 0.0
      %204 = vmatprep.subr.mxu0 0.0
      %205 = vmatpush2.msra.mxu0 0.0
      %206 = vmatprep.subr.mxu0 0.0
      %207 = vmatpush2.msra.mxu0 0.0
      %208 = vmatprep.subr.mxu0 0.0
      %209 = vmatpush2.msra.mxu0 0.0
      %210 = vmatprep.subr.mxu0 0.0
      %211 = vmatpush2.msra.mxu0 0.0
      %212 = vmatprep.subr.mxu0 0.0
      %213 = vmatpush2.msra.mxu0 0.0
      %214 = vmatprep.subr.mxu0 0.0
      %215 = vmatpush2.msra.mxu0 0.0
      %216 = vmatprep.subr.mxu0 0.0
      %217 = vmatpush2.msra.mxu0 0.0
      %218 = vmatprep.subr.mxu0 0.0
      %219 = vmatpush2.msra.mxu0 0.0
      %220 = vmatprep.subr.mxu0 0.0
      %221 = vmatpush2.msra.mxu0 0.0
      %222 = vmatprep.subr.mxu0 0.0
      %223 = vmatpush2.msra.mxu0 0.0
      %224 = vmatprep.subr.mxu0 0.0
      %225 = vmatpush2.msra.mxu0 0.0
      %226 = vmatprep.subr.mxu0 0.0
      %227 = vmatpush2.msra.mxu0 0.0
      %228 = vmatprep.subr.mxu0 0.0
      %229 = vmatpush2.msra.mxu0 0.0
      %230 = vmatprep.mubr.f32.mxu0 0.0
      %231 = vmatmul.mubr.f32.gmra.mxu0 %v155
      %v232 = vpop.f32.mrf.mxu0
      %v233 = vadd.f32 0.0, %v232
      %v234 = vpop.f32.mrf.mxu0
      %235 = vmatprep.mubr.f32.mxu0 0.0
      %236 = vmatmul.mubr.f32.gmra.mxu0 %v158
      %v237 = vpop.f32.mrf.mxu0
      %v238 = vadd.f32 0.0, %v237
      %v239 = vpop.f32.mrf.mxu0
      %240 = vmatprep.mubr.f32.mxu0 0.0
      %241 = vmatmul.mubr.f32.gmra.mxu0 %v161
      %v242 = vpop.f32.mrf.mxu0
      %v243 = vadd.f32 0.0, %v242
      %v244 = vpop.f32.mrf.mxu0
      %245 = vmatprep.mubr.f32.mxu0 0.0
      %246 = vmatmul.mubr.f32.gmra.mxu0 %v164
      %v247 = vpop.f32.mrf.mxu0
      %v248 = vadd.f32 0.0, %v247
      %v249 = vpop.f32.mrf.mxu0
      %250 = vdwg.mxu0
      %v251 = vcvt.f32.s32.to.zero.pseudo %v233
      %v252 = vcvt.f32.s32.to.zero.pseudo %v238
      %v253 = vcvt.f32.s32.to.zero.pseudo %v243
      %v254 = vcvt.f32.s32.to.zero.pseudo %v248
      %v255 = vshra.s32 %v120, 8
      %v256 = vshra.s32 %v121, 8
      %v257 = vshra.s32 %v122, 8
      %v258 = vshra.s32 %v123, 8
      %v259 = vand.u32 %v255, 255
      %v260 = vand.u32 %v256, 255
      %v261 = vand.u32 %v257, 255
      %v262 = vand.u32 %v258, 255
      %v263 = vcvt.s32.f32 %v259
      %v264 = vcvt.s32.f32 %v260
      %v265 = vcvt.s32.f32 %v261
      %v266 = vcvt.s32.f32 %v262
      %v268 = vsel %vm153, %v263, 0
      %v271 = vsel %vm153, %v264, 0
      %v274 = vsel %vm153, %v265, 0
      %v277 = vsel %vm153, %v266, 0
      %279 = vmatprep.subr.mxu0 0.0
      %280 = vmatpush1.msra.mxu0 0.0
      %281 = vmatprep.subr.mxu0 0.0
      %282 = vmatpush1.msra.mxu0 0.0
      %283 = vmatprep.subr.mxu0 0.0
      %284 = vmatpush1.msra.mxu0 0.0
      %285 = vmatprep.subr.mxu0 0.0
      %286 = vmatpush1.msra.mxu0 0.0
      %287 = vmatprep.subr.mxu0 0.0
      %288 = vmatpush1.msra.mxu0 0.0
      %289 = vmatprep.subr.mxu0 0.0
      %290 = vmatpush1.msra.mxu0 0.0
      %291 = vmatprep.subr.mxu0 0.0
      %292 = vmatpush1.msra.mxu0 0.0
      %293 = vmatprep.subr.mxu0 0.0
      %294 = vmatpush1.msra.mxu0 0.0
      %295 = vmatprep.subr.mxu0 0.0
      %296 = vmatpush1.msra.mxu0 0.0
      %297 = vmatprep.subr.mxu0 0.0
      %298 = vmatpush1.msra.mxu0 0.0
      %299 = vmatprep.subr.mxu0 0.0
      %300 = vmatpush1.msra.mxu0 0.0
      %301 = vmatprep.subr.mxu0 0.0
      %302 = vmatpush1.msra.mxu0 0.0
      %303 = vmatprep.subr.mxu0 0.0
      %304 = vmatpush1.msra.mxu0 0.0
      %305 = vmatprep.subr.mxu0 0.0
      %306 = vmatpush1.msra.mxu0 0.0
      %307 = vmatprep.subr.mxu0 0.0
      %308 = vmatpush1.msra.mxu0 %v140
      %309 = vmatprep.subr.mxu0 0.0
      %310 = vmatpush1.msra.mxu0 %v139
      %311 = vmatprep.subr.mxu0 0.0
      %312 = vmatpush2.msra.mxu0 0.0
      %313 = vmatprep.subr.mxu0 0.0
      %314 = vmatpush2.msra.mxu0 0.0
      %315 = vmatprep.subr.mxu0 0.0
      %316 = vmatpush2.msra.mxu0 0.0
      %317 = vmatprep.subr.mxu0 0.0
      %318 = vmatpush2.msra.mxu0 0.0
      %319 = vmatprep.subr.mxu0 0.0
      %320 = vmatpush2.msra.mxu0 0.0
      %321 = vmatprep.subr.mxu0 0.0
      %322 = vmatpush2.msra.mxu0 0.0
      %323 = vmatprep.subr.mxu0 0.0
      %324 = vmatpush2.msra.mxu0 0.0
      %325 = vmatprep.subr.mxu0 0.0
      %326 = vmatpush2.msra.mxu0 0.0
      %327 = vmatprep.subr.mxu0 0.0
      %328 = vmatpush2.msra.mxu0 0.0
      %329 = vmatprep.subr.mxu0 0.0
      %330 = vmatpush2.msra.mxu0 0.0
      %331 = vmatprep.subr.mxu0 0.0
      %332 = vmatpush2.msra.mxu0 0.0
      %333 = vmatprep.subr.mxu0 0.0
      %334 = vmatpush2.msra.mxu0 0.0
      %335 = vmatprep.subr.mxu0 0.0
      %336 = vmatpush2.msra.mxu0 0.0
      %337 = vmatprep.subr.mxu0 0.0
      %338 = vmatpush2.msra.mxu0 0.0
      %339 = vmatprep.subr.mxu0 0.0
      %340 = vmatpush2.msra.mxu0 0.0
      %341 = vmatprep.subr.mxu0 0.0
      %342 = vmatpush2.msra.mxu0 0.0
      %343 = vmatprep.mubr.f32.mxu0 0.0
      %344 = vmatmul.mubr.f32.gmra.mxu0 %v268
      %v345 = vpop.f32.mrf.mxu0
      %v346 = vadd.f32 0.0, %v345
      %v347 = vpop.f32.mrf.mxu0
      %348 = vmatprep.mubr.f32.mxu0 0.0
      %349 = vmatmul.mubr.f32.gmra.mxu0 %v271
      %v350 = vpop.f32.mrf.mxu0
      %v351 = vadd.f32 0.0, %v350
      %v352 = vpop.f32.mrf.mxu0
      %353 = vmatprep.mubr.f32.mxu0 0.0
      %354 = vmatmul.mubr.f32.gmra.mxu0 %v274
      %v355 = vpop.f32.mrf.mxu0
      %v356 = vadd.f32 0.0, %v355
      %v357 = vpop.f32.mrf.mxu0
      %358 = vmatprep.mubr.f32.mxu0 0.0
      %359 = vmatmul.mubr.f32.gmra.mxu0 %v277
      %v360 = vpop.f32.mrf.mxu0
      %v361 = vadd.f32 0.0, %v360
      %v362 = vpop.f32.mrf.mxu0
      %363 = vdwg.mxu0
      %v364 = vcvt.f32.s32.to.zero.pseudo %v346
      %v365 = vcvt.f32.s32.to.zero.pseudo %v351
      %v366 = vcvt.f32.s32.to.zero.pseudo %v356
      %v367 = vcvt.f32.s32.to.zero.pseudo %v361
      %v368 = vshll.u32 %v364, 8
      %v369 = vshll.u32 %v365, 8
      %v370 = vshll.u32 %v366, 8
      %v371 = vshll.u32 %v367, 8
      %v372 = vor.u32 %v251, %v368
      %v373 = vor.u32 %v252, %v369
      %v374 = vor.u32 %v253, %v370
      %v375 = vor.u32 %v254, %v371
      %v376 = vshra.s32 %v120, 16
      %v377 = vshra.s32 %v121, 16
      %v378 = vshra.s32 %v122, 16
      %v379 = vshra.s32 %v123, 16
      %v380 = vand.u32 %v376, 255
      %v381 = vand.u32 %v377, 255
      %v382 = vand.u32 %v378, 255
      %v383 = vand.u32 %v379, 255
      %v384 = vcvt.s32.f32 %v380
      %v385 = vcvt.s32.f32 %v381
      %v386 = vcvt.s32.f32 %v382
      %v387 = vcvt.s32.f32 %v383
      %v389 = vsel %vm153, %v384, 0
      %v392 = vsel %vm153, %v385, 0
      %v395 = vsel %vm153, %v386, 0
      %v398 = vsel %vm153, %v387, 0
      %400 = vmatprep.subr.mxu0 0.0
      %401 = vmatpush1.msra.mxu0 0.0
      %402 = vmatprep.subr.mxu0 0.0
      %403 = vmatpush1.msra.mxu0 0.0
      %404 = vmatprep.subr.mxu0 0.0
      %405 = vmatpush1.msra.mxu0 0.0
      %406 = vmatprep.subr.mxu0 0.0
      %407 = vmatpush1.msra.mxu0 0.0
      %408 = vmatprep.subr.mxu0 0.0
      %409 = vmatpush1.msra.mxu0 0.0
      %410 = vmatprep.subr.mxu0 0.0
      %411 = vmatpush1.msra.mxu0 0.0
      %412 = vmatprep.subr.mxu0 0.0
      %413 = vmatpush1.msra.mxu0 0.0
      %414 = vmatprep.subr.mxu0 0.0
      %415 = vmatpush1.msra.mxu0 0.0
      %416 = vmatprep.subr.mxu0 0.0
      %417 = vmatpush1.msra.mxu0 0.0
      %418 = vmatprep.subr.mxu0 0.0
      %419 = vmatpush1.msra.mxu0 0.0
      %420 = vmatprep.subr.mxu0 0.0
      %421 = vmatpush1.msra.mxu0 0.0
      %422 = vmatprep.subr.mxu0 0.0
      %423 = vmatpush1.msra.mxu0 0.0
      %424 = vmatprep.subr.mxu0 0.0
      %425 = vmatpush1.msra.mxu0 0.0
      %426 = vmatprep.subr.mxu0 0.0
      %427 = vmatpush1.msra.mxu0 0.0
      %428 = vmatprep.subr.mxu0 0.0
      %429 = vmatpush1.msra.mxu0 %v140
      %430 = vmatprep.subr.mxu0 0.0
      %431 = vmatpush1.msra.mxu0 %v139
      %432 = vmatprep.subr.mxu0 0.0
      %433 = vmatpush2.msra.mxu0 0.0
      %434 = vmatprep.subr.mxu0 0.0
      %435 = vmatpush2.msra.mxu0 0.0
      %436 = vmatprep.subr.mxu0 0.0
      %437 = vmatpush2.msra.mxu0 0.0
      %438 = vmatprep.subr.mxu0 0.0
      %439 = vmatpush2.msra.mxu0 0.0
      %440 = vmatprep.subr.mxu0 0.0
      %441 = vmatpush2.msra.mxu0 0.0
      %442 = vmatprep.subr.mxu0 0.0
      %443 = vmatpush2.msra.mxu0 0.0
      %444 = vmatprep.subr.mxu0 0.0
      %445 = vmatpush2.msra.mxu0 0.0
      %446 = vmatprep.subr.mxu0 0.0
      %447 = vmatpush2.msra.mxu0 0.0
      %448 = vmatprep.subr.mxu0 0.0
      %449 = vmatpush2.msra.mxu0 0.0
      %450 = vmatprep.subr.mxu0 0.0
      %451 = vmatpush2.msra.mxu0 0.0
      %452 = vmatprep.subr.mxu0 0.0
      %453 = vmatpush2.msra.mxu0 0.0
      %454 = vmatprep.subr.mxu0 0.0
      %455 = vmatpush2.msra.mxu0 0.0
      %456 = vmatprep.subr.mxu0 0.0
      %457 = vmatpush2.msra.mxu0 0.0
      %458 = vmatprep.subr.mxu0 0.0
      %459 = vmatpush2.msra.mxu0 0.0
      %460 = vmatprep.subr.mxu0 0.0
      %461 = vmatpush2.msra.mxu0 0.0
      %462 = vmatprep.subr.mxu0 0.0
      %463 = vmatpush2.msra.mxu0 0.0
      %464 = vmatprep.mubr.f32.mxu0 0.0
      %465 = vmatmul.mubr.f32.gmra.mxu0 %v389
      %v466 = vpop.f32.mrf.mxu0
      %v467 = vadd.f32 0.0, %v466
      %v468 = vpop.f32.mrf.mxu0
      %469 = vmatprep.mubr.f32.mxu0 0.0
      %470 = vmatmul.mubr.f32.gmra.mxu0 %v392
      %v471 = vpop.f32.mrf.mxu0
      %v472 = vadd.f32 0.0, %v471
      %v473 = vpop.f32.mrf.mxu0
      %474 = vmatprep.mubr.f32.mxu0 0.0
      %475 = vmatmul.mubr.f32.gmra.mxu0 %v395
      %v476 = vpop.f32.mrf.mxu0
      %v477 = vadd.f32 0.0, %v476
      %v478 = vpop.f32.mrf.mxu0
      %479 = vmatprep.mubr.f32.mxu0 0.0
      %480 = vmatmul.mubr.f32.gmra.mxu0 %v398
      %v481 = vpop.f32.mrf.mxu0
      %v482 = vadd.f32 0.0, %v481
      %v483 = vpop.f32.mrf.mxu0
      %484 = vdwg.mxu0
      %v485 = vcvt.f32.s32.to.zero.pseudo %v467
      %v486 = vcvt.f32.s32.to.zero.pseudo %v472
      %v487 = vcvt.f32.s32.to.zero.pseudo %v477
      %v488 = vcvt.f32.s32.to.zero.pseudo %v482
      %v489 = vshll.u32 %v485, 16
      %v490 = vshll.u32 %v486, 16
      %v491 = vshll.u32 %v487, 16
      %v492 = vshll.u32 %v488, 16
      %v493 = vor.u32 %v372, %v489
      %v494 = vor.u32 %v373, %v490
      %v495 = vor.u32 %v374, %v491
      %v496 = vor.u32 %v375, %v492
      %v497 = vshra.s32 %v120, 24
      %v498 = vshra.s32 %v121, 24
      %v499 = vshra.s32 %v122, 24
      %v500 = vshra.s32 %v123, 24
      %v501 = vand.u32 %v497, 255
      %v502 = vand.u32 %v498, 255
      %v503 = vand.u32 %v499, 255
      %v504 = vand.u32 %v500, 255
      %v505 = vcvt.s32.f32 %v501
      %v506 = vcvt.s32.f32 %v502
      %v507 = vcvt.s32.f32 %v503
      %v508 = vcvt.s32.f32 %v504
      %v510 = vsel %vm153, %v505, 0
      %v513 = vsel %vm153, %v506, 0
      %v516 = vsel %vm153, %v507, 0
      %v519 = vsel %vm153, %v508, 0
      %521 = vmatprep.subr.mxu0 0.0
      %522 = vmatpush1.msra.mxu0 0.0
      %523 = vmatprep.subr.mxu0 0.0
      %524 = vmatpush1.msra.mxu0 0.0
      %525 = vmatprep.subr.mxu0 0.0
      %526 = vmatpush1.msra.mxu0 0.0
      %527 = vmatprep.subr.mxu0 0.0
      %528 = vmatpush1.msra.mxu0 0.0
      %529 = vmatprep.subr.mxu0 0.0
      %530 = vmatpush1.msra.mxu0 0.0
      %531 = vmatprep.subr.mxu0 0.0
      %532 = vmatpush1.msra.mxu0 0.0
      %533 = vmatprep.subr.mxu0 0.0
      %534 = vmatpush1.msra.mxu0 0.0
      %535 = vmatprep.subr.mxu0 0.0
      %536 = vmatpush1.msra.mxu0 0.0
      %537 = vmatprep.subr.mxu0 0.0
      %538 = vmatpush1.msra.mxu0 0.0
      %539 = vmatprep.subr.mxu0 0.0
      %540 = vmatpush1.msra.mxu0 0.0
      %541 = vmatprep.subr.mxu0 0.0
      %542 = vmatpush1.msra.mxu0 0.0
      %543 = vmatprep.subr.mxu0 0.0
      %544 = vmatpush1.msra.mxu0 0.0
      %545 = vmatprep.subr.mxu0 0.0
      %546 = vmatpush1.msra.mxu0 0.0
      %547 = vmatprep.subr.mxu0 0.0
      %548 = vmatpush1.msra.mxu0 0.0
      %549 = vmatprep.subr.mxu0 0.0
      %550 = vmatpush1.msra.mxu0 %v140
      %551 = vmatprep.subr.mxu0 0.0
      %552 = vmatpush1.msra.mxu0 %v139
      %553 = vmatprep.subr.mxu0 0.0
      %554 = vmatpush2.msra.mxu0 0.0
      %555 = vmatprep.subr.mxu0 0.0
      %556 = vmatpush2.msra.mxu0 0.0
      %557 = vmatprep.subr.mxu0 0.0
      %558 = vmatpush2.msra.mxu0 0.0
      %559 = vmatprep.subr.mxu0 0.0
      %560 = vmatpush2.msra.mxu0 0.0
      %561 = vmatprep.subr.mxu0 0.0
      %562 = vmatpush2.msra.mxu0 0.0
      %563 = vmatprep.subr.mxu0 0.0
      %564 = vmatpush2.msra.mxu0 0.0
      %565 = vmatprep.subr.mxu0 0.0
      %566 = vmatpush2.msra.mxu0 0.0
      %567 = vmatprep.subr.mxu0 0.0
      %568 = vmatpush2.msra.mxu0 0.0
      %569 = vmatprep.subr.mxu0 0.0
      %570 = vmatpush2.msra.mxu0 0.0
      %571 = vmatprep.subr.mxu0 0.0
      %572 = vmatpush2.msra.mxu0 0.0
      %573 = vmatprep.subr.mxu0 0.0
      %574 = vmatpush2.msra.mxu0 0.0
      %575 = vmatprep.subr.mxu0 0.0
      %576 = vmatpush2.msra.mxu0 0.0
      %577 = vmatprep.subr.mxu0 0.0
      %578 = vmatpush2.msra.mxu0 0.0
      %579 = vmatprep.subr.mxu0 0.0
      %580 = vmatpush2.msra.mxu0 0.0
      %581 = vmatprep.subr.mxu0 0.0
      %582 = vmatpush2.msra.mxu0 0.0
      %583 = vmatprep.subr.mxu0 0.0
      %584 = vmatpush2.msra.mxu0 0.0
      %585 = vmatprep.mubr.f32.mxu0 0.0
      %586 = vmatmul.mubr.f32.gmra.mxu0 %v510
      %v587 = vpop.f32.mrf.mxu0
      %v588 = vadd.f32 0.0, %v587
      %v589 = vpop.f32.mrf.mxu0
      %590 = vmatprep.mubr.f32.mxu0 0.0
      %591 = vmatmul.mubr.f32.gmra.mxu0 %v513
      %v592 = vpop.f32.mrf.mxu0
      %v593 = vadd.f32 0.0, %v592
      %v594 = vpop.f32.mrf.mxu0
      %595 = vmatprep.mubr.f32.mxu0 0.0
      %596 = vmatmul.mubr.f32.gmra.mxu0 %v516
      %v597 = vpop.f32.mrf.mxu0
      %v598 = vadd.f32 0.0, %v597
      %v599 = vpop.f32.mrf.mxu0
      %600 = vmatprep.mubr.f32.mxu0 0.0
      %601 = vmatmul.mubr.f32.gmra.mxu0 %v519
      %v602 = vpop.f32.mrf.mxu0
      %v603 = vadd.f32 0.0, %v602
      %v604 = vpop.f32.mrf.mxu0
      %605 = vdwg.mxu0
      %v606 = vcvt.f32.s32.to.zero.pseudo %v588
      %v607 = vcvt.f32.s32.to.zero.pseudo %v593
      %v608 = vcvt.f32.s32.to.zero.pseudo %v598
      %v609 = vcvt.f32.s32.to.zero.pseudo %v603
      %v610 = vshll.u32 %v606, 24
      %v611 = vshll.u32 %v607, 24
      %v612 = vshll.u32 %v608, 24
      %v613 = vshll.u32 %v609, 24
      %v614 = vor.u32 %v493, %v610
      %v615 = vor.u32 %v494, %v611
      %v616 = vor.u32 %v495, %v612
      %v617 = vor.u32 %v496, %v613
      %vm622 = vcmask 261120
      %623 = vst.msk [vmem:[%s118] sm:$0xff] %vm622, %v614
      %624 = vst.msk [vmem:[%s118 + $0x8] sm:$0xff] %vm622, %v615
      %625 = vst.msk [vmem:[%s118 + $0x10] sm:$0xff] %vm622, %v616
      %626 = vst.msk [vmem:[%s118 + $0x18] sm:$0xff] %vm622, %v617
      %627 = vrot.lane.b32.xlu0 %v614, 32
      %v628 = vpop.permute.xlu0 %627
      %629 = vrot.lane.b32.xlu0 %v615, 32
      %v630 = vpop.permute.xlu0 %629
      %631 = vrot.lane.b32.xlu0 %v616, 32
      %v632 = vpop.permute.xlu0 %631
      %633 = vrot.lane.b32.xlu0 %v617, 32
      %v634 = vpop.permute.xlu0 %633
      %vm639 = vcmask 523520
      %640 = vst.msk [vmem:[%s118] sm:$0xff] %vm639, %v628
      %641 = vst.msk [vmem:[%s118 + $0x8] sm:$0xff] %vm639, %v630
      %642 = vst.msk [vmem:[%s118 + $0x10] sm:$0xff] %vm639, %v632
      %643 = vst.msk [vmem:[%s118 + $0x18] sm:$0xff] %vm639, %v634
      %s644 = smul.u32 4, %s12
      %p645 = scmp.lt.s32.totalorder %s644, 15
      %s646 = scalar_select %p645, %s644, 15
      %s647 = smul.addr %s646, 8
      %s648 = scalar_lea.vmem %s1, %s647
      // Predicated region
      $region25: #{tpu_custom_call.1} parent=23 // pred_check
        %p649 = pneg %p56
      $region26: #{tpu_custom_call.1} parent=23 // pred_check_branch
        %651 = sbr.rel (%p649) target = $region28
      $region27: #{tpu_custom_call.1} parent=23 // pred_region
        %s652 = smul.u32 4, %s12
      $region28: #{tpu_custom_call.1} parent=23 // pred_fallthru
        _
    $region24: #{tpu_custom_call.1} parent=5 // pred_fallthru
      _
    %p653 = scmp.le.s32.totalorder 2, %s7
    // Predicated region
    $region29: #{tpu_custom_call.1} parent=5 // pred_check
      %p654 = pneg %p653
    $region30: #{tpu_custom_call.1} parent=5 // pred_check_branch
      %656 = sbr.rel (%p654) target = $region32
    $region31: #{tpu_custom_call.1} parent=5 // pred_region
      %s657 = ssub.s32 %s7, 2
      // Predicated region
      $region33: #{tpu_custom_call.1} parent=31 // pred_check
        %p658 = pneg %p62
      $region34: #{tpu_custom_call.1} parent=31 // pred_check_branch
        %660 = sbr.rel (%p658) target = $region36
      $region35: #{tpu_custom_call.1} parent=31 // pred_region
        %s661 = smul.u32 4, %s13
        %p662 = scmp.lt.s32.totalorder %s661, 15
        %s663 = scalar_select %p662, %s661, 15
        %s664 = smul.addr %s663, 8
        %s665 = scalar_lea.vmem %s1, %s664
      $region36: #{tpu_custom_call.1} parent=31 // pred_fallthru
        _
    $region32: #{tpu_custom_call.1} parent=5 // pred_fallthru
      _
  $region6: #{tpu_custom_call.1} parent=0 // loop_footer
    %s11 = sadd.s32 1, %s7
  $region7: #{tpu_custom_call.1} parent=0 // loop_footer_branch
    %6 = sbr.rel target = $region3
  $region8: #{tpu_custom_call.1} parent=0 // loop_exit
    _

</llo_original>
